<compile_context>
chip_gen: v7x
topology: tpu7x:2x2x1
jax: 0.10.0
libtpu: 0.0.40
codegen_flags: <defaults>
</compile_context>

<pallas_src>
import functools
import math

import jax
import jax.numpy as jnp
from jax.experimental import pallas as pl
from jax.experimental.pallas import tpu as pltpu


# ------------------------------------------------------- tiled linear (MXU) ---
def _linear_kernel(x_ref, w_ref, b_ref, o_ref):
    acc = jnp.dot(x_ref[...], w_ref[...], preferred_element_type=jnp.float32)
    o_ref[...] = (acc + b_ref[...]).astype(o_ref.dtype)


def _pick_tm(M, max_tm=512):
    # Full rows if small; otherwise 512-row tiles (multiple of 8, ~85% of HBM
    # roofline per the measured tile sweep, comfortably within default VMEM
    # on v5e/v6e/v7x for d_model <= 1024 with double buffering).
    return M if M <= max_tm else max_tm


def linear(x, w, b):
    """x: (M, Cin), w: (Cin, Cout) [already transposed vs torch], b: (Cout,)."""
    M, K = x.shape
    N = w.shape[1]
    TM = _pick_tm(M)
    grid = (pl.cdiv(M, TM),)
    cost = pl.CostEstimate(flops=2 * M * K * N, transcendentals=0,
                           bytes_accessed=(M * K + K * N + M * N) * x.dtype.itemsize)
    return pl.pallas_call(
        _linear_kernel,
        out_shape=jax.ShapeDtypeStruct((M, N), x.dtype),
        grid=grid,
        in_specs=[pl.BlockSpec((TM, K), lambda i: (i, 0)),
                  pl.BlockSpec((K, N), lambda i: (0, 0)),
                  pl.BlockSpec((1, N), lambda i: (0, 0))],
        out_specs=pl.BlockSpec((TM, N), lambda i: (i, 0)),
        compiler_params=pltpu.CompilerParams(dimension_semantics=("parallel",)),
        cost_estimate=cost,
    )(x, w, b.reshape(1, N))


# ------------------------------------------------ fused q/k/v projection ------
def _qkv_kernel(x_ref, w_ref, b_ref, q_ref, k_ref, v_ref):
    acc = jnp.dot(x_ref[...], w_ref[...], preferred_element_type=jnp.float32)
    acc = acc + b_ref[...]
    N = q_ref.shape[-1]
    q_ref[...] = acc[:, :N].astype(q_ref.dtype)
    k_ref[...] = acc[:, N:2 * N].astype(k_ref.dtype)
    v_ref[...] = acc[:, 2 * N:].astype(v_ref.dtype)


def qkv_project(x, w_qkv, b_qkv):
    """x: (M, C), w_qkv: (C, 3C), b_qkv: (3C,) -> (q, k, v), each (M, C)."""
    M, K = x.shape
    N3 = w_qkv.shape[1]
    N = N3 // 3
    TM = _pick_tm(M)
    grid = (pl.cdiv(M, TM),)
    out_sds = jax.ShapeDtypeStruct((M, N), x.dtype)
    cost = pl.CostEstimate(flops=2 * M * K * N3, transcendentals=0,
                           bytes_accessed=(M * K + K * N3 + M * N3) * x.dtype.itemsize)
    return pl.pallas_call(
        _qkv_kernel,
        out_shape=(out_sds, out_sds, out_sds),
        grid=grid,
        in_specs=[pl.BlockSpec((TM, K), lambda i: (i, 0)),
                  pl.BlockSpec((K, N3), lambda i: (0, 0)),
                  pl.BlockSpec((1, N3), lambda i: (0, 0))],
        out_specs=(pl.BlockSpec((TM, N), lambda i: (i, 0)),
                   pl.BlockSpec((TM, N), lambda i: (i, 0)),
                   pl.BlockSpec((TM, N), lambda i: (i, 0))),
        compiler_params=pltpu.CompilerParams(dimension_semantics=("parallel",)),
        cost_estimate=cost,
    )(x, w_qkv, b_qkv.reshape(1, N3))


# ----------------------------------------------------------------- attention --
def _attn_kernel(q_ref, k_ref, v_ref, o_ref, *, head):
    q = q_ref[...]          # (Bblk, L, C), heads packed along C
    k = k_ref[...]
    v = v_ref[...]
    c_h = q.shape[-1] // head
    scale = 1.0 / math.sqrt(c_h)
    outs = []
    for hi in range(head):                                   # static unroll
        lo = hi * c_h
        qh = q[:, :, lo:lo + c_h].astype(jnp.float32) * scale   # scale folded into q
        kh = k[:, :, lo:lo + c_h].astype(jnp.float32)
        vh = v[:, :, lo:lo + c_h].astype(jnp.float32)
        # contraction on the last dims -> no explicit transpose of K
        s = jnp.einsum('bld,bmd->blm', qh, kh,
                       preferred_element_type=jnp.float32)
        s = s - jnp.max(s, axis=-1, keepdims=True)
        p = jnp.exp(s)
        denom = jnp.sum(p, axis=-1, keepdims=True)
        inv = pl.reciprocal(denom, approx=True)              # EUP slot (cheap)
        inv = inv * (2.0 - denom * inv)                      # 1 Newton step -> ~f32 exact
        p = p * inv
        # TODO(synk): dropout on p omitted (eval-mode identity).
        outs.append(jnp.einsum('blm,bmd->bld', p, vh,
                               preferred_element_type=jnp.float32))
    # single lane-dense store of the whole (Bblk, L, C) block
    o_ref[...] = jnp.concatenate(outs, axis=-1).astype(o_ref.dtype)


def _pick_block_batch(B, L, C, budget_bytes=8 * 1024 * 1024):
    """Batch several (L, C) slices per grid step to amortize per-step overhead."""
    per = 2 * 4 * L * C * 4 + 4 * L * L * 4   # dbl-buffered I/O + f32 score scratch
    bblk = max(1, min(B, 8, budget_bytes // max(per, 1)))
    while B % bblk:
        bblk -= 1
    return bblk


def attention(q, k, v, head):
    """q/k/v: (B, L, C) with heads packed along C; returns (B, L, C)."""
    B, L, C = q.shape
    bblk = _pick_block_batch(B, L, C)
    grid = (B // bblk,)
    in_spec = pl.BlockSpec((bblk, L, C), lambda i: (i, 0, 0))
    cost = pl.CostEstimate(flops=4 * B * L * L * C,
                           transcendentals=B * head * L * L,
                           bytes_accessed=4 * B * L * C * q.dtype.itemsize)
    return pl.pallas_call(
        functools.partial(_attn_kernel, head=head),
        out_shape=jax.ShapeDtypeStruct((B, L, C), q.dtype),
        grid=grid,
        in_specs=[in_spec, in_spec, in_spec],
        out_specs=pl.BlockSpec((bblk, L, C), lambda i: (i, 0, 0)),
        compiler_params=pltpu.CompilerParams(dimension_semantics=("parallel",)),
        cost_estimate=cost,
    )(q, k, v)


# -------------------------------------------------------------------- module --
class MultiHeadedAttention:
    def __init__(self, token_size, d_model, head, mode, p=0.1, key=None):
        self.mode = mode
        self.head = head
        self.h, self.w = token_size
        self.p = p  # dropout prob (identity at eval)
        key = jax.random.PRNGKey(0) if key is None else key
        ks = jax.random.split(key, 8)

        def init_linear(kw, kb, fan_in, fan_out):
            bound = 1.0 / math.sqrt(fan_in)  # torch nn.Linear default-ish init
            w = jax.random.uniform(kw, (fan_in, fan_out), jnp.float32, -bound, bound)
            b = jax.random.uniform(kb, (fan_out,), jnp.float32, -bound, bound)
            return w, b

        self.wq, self.bq = init_linear(ks[0], ks[1], d_model, d_model)
        self.wk, self.bk = init_linear(ks[2], ks[3], d_model, d_model)
        self.wv, self.bv = init_linear(ks[4], ks[5], d_model, d_model)
        self.wo, self.bo = init_linear(ks[6], ks[7], d_model, d_model)
        # fused qkv parameters -> one HBM read of x for all three projections
        self.w_qkv = jnp.concatenate([self.wq, self.wk, self.wv], axis=1)
        self.b_qkv = jnp.concatenate([self.bq, self.bk, self.bv], axis=0)

    def __call__(self, x, t):
        bt, n, c = x.shape
        b = bt // t
        head = self.head
        xf = x.reshape(bt * n, c)

        q, k, v = qkv_project(xf, self.w_qkv, self.b_qkv)     # each (bt*n, c)

        if self.mode == 's':
            # Spatial attention: heads stay packed along the channel axis inside
            # the kernel, so NO head-split transpose ever touches HBM — we attend
            # directly over the n tokens of each (b, t) slice.
            att = attention(q.reshape(bt, n, c), k.reshape(bt, n, c),
                            v.reshape(bt, n, c), head)         # (bt, n, c)
        elif self.mode == 't':
            h2, w2 = self.h // 2, self.w // 2
            L = t * h2 * w2

            def regroup(z):   # (bt*n, c) -> (b*4, L, c); channels stay packed
                z = z.reshape(b, t, 2, h2, 2, w2, c)
                z = z.transpose(0, 2, 4, 1, 3, 5, 6)
                return z.reshape(b * 4, L, c)

            att = attention(regroup(q), regroup(k), regroup(v), head)  # (b*4, L, c)
            att = att.reshape(b, 2, 2, t, h2, w2, c)
            att = att.transpose(0, 3, 1, 4, 2, 5, 6).reshape(bt, n, c)
        else:
            raise ValueError(f"unknown mode {self.mode!r}")

        out = linear(att.reshape(bt * n, c), self.wo, self.bo)
        return out.reshape(bt, n, c)


# --------------------------------------------------------- pure-JAX reference
def _reference(m, x, t):
    bt, n, c = x.shape
    b = bt // t
    head = m.head
    c_h = c // head

    def lin(z, w, bias):
        return z @ w + bias

    q = lin(x, m.wq, m.bq)
    k = lin(x, m.wk, m.bk)
    v = lin(x, m.wv, m.bv)

    if m.mode == 's':
        def sp(z):
            return z.reshape(b, t, n, head, c_h).transpose(0, 1, 3, 2, 4)

        qh, kh, vh = sp(q), sp(k), sp(v)
        s = jnp.einsum('...ld,...md->...lm', qh, kh) / math.sqrt(c_h)
        p = jax.nn.softmax(s, axis=-1)
        att = jnp.einsum('...lm,...md->...ld', p, vh)
        att = att.transpose(0, 1, 3, 2, 4).reshape(bt, n, c)
    else:
        h2, w2 = m.h // 2, m.w // 2

        def sp(z):
            z = z.reshape(b, t, 2, h2, 2, w2, head, c_h)
            return z.transpose(0, 2, 4, 6, 1, 3, 5, 7).reshape(b, 4, head, -1, c_h)

        qh, kh, vh = sp(q), sp(k), sp(v)
        s = jnp.einsum('...ld,...md->...lm', qh, kh) / math.sqrt(c_h)
        p = jax.nn.softmax(s, axis=-1)
        att = jnp.einsum('...lm,...md->...ld', p, vh)
        att = att.reshape(b, 2, 2, head, t, h2, w2, c_h)
        att = att.transpose(0, 4, 1, 5, 2, 6, 3, 7).reshape(bt, n, c)

    return lin(att, m.wo, m.bo)


# -------------------------------------------------------------------- main ---
if __name__ == "__main__":
    key = jax.random.PRNGKey(0)
    kx, kp = jax.random.split(key)

    b, t, h, w, d_model, head = 2, 2, 4, 4, 32, 4
    n = h * w
    x = jax.random.normal(kx, (b * t, n, d_model), dtype=jnp.float32)

    ok = True
    for mode in ("s", "t"):
        mha = MultiHeadedAttention((h, w), d_model, head, mode, key=kp)
        out = jax.block_until_ready(mha(x, t))
        ref = _reference(mha, x, t)
        ok = ok and bool(jnp.allclose(out, ref, atol=1e-3, rtol=1e-3))

    if ok:
        print("KERNEL_OK")
</pallas_src>

<mosaic_0001>
module attributes {stable_mosaic.version = 11 : i64} {
  func.func @_qkv_kernel(%arg0: i32, %arg1: memref<64x32xf32, #tpu.memory_space<vmem>>, %arg2: memref<32x96xf32, #tpu.memory_space<vmem>>, %arg3: memref<1x96xf32, #tpu.memory_space<vmem>>, %arg4: memref<64x32xf32, #tpu.memory_space<vmem>>, %arg5: memref<64x32xf32, #tpu.memory_space<vmem>>, %arg6: memref<64x32xf32, #tpu.memory_space<vmem>>) attributes {dimension_semantics = [#tpu.dimension_semantics<parallel>], iteration_bounds = array<i64: 1>, scalar_prefetch = 0 : i64, scratch_operands = 0 : i64, tpu.core_type = #tpu.core_type<tc>, window_params = [{transform_indices = @transform_0, window_bounds = array<i64: 64, 32>}, {pipeline_mode = #tpu.pipeline_mode<synchronous>, transform_indices = @transform_1, window_bounds = array<i64: 32, 96>}, {pipeline_mode = #tpu.pipeline_mode<synchronous>, transform_indices = @transform_2, window_bounds = array<i64: 1, 96>}, {transform_indices = @transform_3, window_bounds = array<i64: 64, 32>}, {transform_indices = @transform_4, window_bounds = array<i64: 64, 32>}, {transform_indices = @transform_5, window_bounds = array<i64: 64, 32>}]} {
    %c0 = arith.constant 0 : index
    %c0_0 = arith.constant 0 : index
    %0 = vector.load %arg1[%c0, %c0_0] : memref<64x32xf32, #tpu.memory_space<vmem>>, vector<64x32xf32>
    %c0_1 = arith.constant 0 : index
    %c0_2 = arith.constant 0 : index
    %1 = vector.load %arg2[%c0_1, %c0_2] : memref<32x96xf32, #tpu.memory_space<vmem>>, vector<32x96xf32>
    %cst = arith.constant dense<0.000000e+00> : vector<64x96xf32>
    %2 = tpu.matmul %0, %1, %cst {dimension_numbers = #tpu.dot_dimension_numbers<[1], [0], [0], [1], [0, 0, 1, 1], [], []>} : vector<64x32xf32>, vector<32x96xf32>, vector<64x96xf32> -> vector<64x96xf32>
    %c0_3 = arith.constant 0 : index
    %c0_4 = arith.constant 0 : index
    %3 = vector.load %arg3[%c0_3, %c0_4] : memref<1x96xf32, #tpu.memory_space<vmem>>, vector<1x96xf32>
    %4 = vector.broadcast %3 : vector<1x96xf32> to vector<64x96xf32>
    %5 = arith.addf %2, %4 : vector<64x96xf32>
    %6 = vector.extract_strided_slice %5 {offsets = [0, 0], sizes = [64, 32], strides = [1, 1]} : vector<64x96xf32> to vector<64x32xf32>
    %c0_5 = arith.constant 0 : index
    %c0_6 = arith.constant 0 : index
    %7 = vector.load %arg4[%c0_5, %c0_6] : memref<64x32xf32, #tpu.memory_space<vmem>>, vector<64x32xf32>
    tpu.vector_store %arg4[%c0_5, %c0_6], %6 {strides = array<i32>} : memref<64x32xf32, #tpu.memory_space<vmem>>, vector<64x32xf32>,
    %8 = vector.extract_strided_slice %5 {offsets = [0, 32], sizes = [64, 32], strides = [1, 1]} : vector<64x96xf32> to vector<64x32xf32>
    %c0_7 = arith.constant 0 : index
    %c0_8 = arith.constant 0 : index
    %9 = vector.load %arg5[%c0_7, %c0_8] : memref<64x32xf32, #tpu.memory_space<vmem>>, vector<64x32xf32>
    tpu.vector_store %arg5[%c0_7, %c0_8], %8 {strides = array<i32>} : memref<64x32xf32, #tpu.memory_space<vmem>>, vector<64x32xf32>,
    %10 = vector.extract_strided_slice %5 {offsets = [0, 64], sizes = [64, 32], strides = [1, 1]} : vector<64x96xf32> to vector<64x32xf32>
    %c0_9 = arith.constant 0 : index
    %c0_10 = arith.constant 0 : index
    %11 = vector.load %arg6[%c0_9, %c0_10] : memref<64x32xf32, #tpu.memory_space<vmem>>, vector<64x32xf32>
    tpu.vector_store %arg6[%c0_9, %c0_10], %10 {strides = array<i32>} : memref<64x32xf32, #tpu.memory_space<vmem>>, vector<64x32xf32>,
    return
  }
  func.func @transform_0(%arg0: i32) -> (i32, i32) {
    %c0_i32 = arith.constant 0 : i32
    %c0_i32_0 = arith.constant 0 : i32
    return %arg0, %c0_i32 : i32, i32
  }
  func.func @transform_1(%arg0: i32) -> (i32, i32) {
    %c0_i32 = arith.constant 0 : i32
    %c0_i32_0 = arith.constant 0 : i32
    %c0_i32_1 = arith.constant 0 : i32
    return %c0_i32, %c0_i32_0 : i32, i32
  }
  func.func @transform_2(%arg0: i32) -> (i32, i32) {
    %c0_i32 = arith.constant 0 : i32
    %c0_i32_0 = arith.constant 0 : i32
    %c0_i32_1 = arith.constant 0 : i32
    return %c0_i32, %c0_i32_0 : i32, i32
  }
  func.func @transform_3(%arg0: i32) -> (i32, i32) {
    %c0_i32 = arith.constant 0 : i32
    %c0_i32_0 = arith.constant 0 : i32
    return %arg0, %c0_i32 : i32, i32
  }
  func.func @transform_4(%arg0: i32) -> (i32, i32) {
    %c0_i32 = arith.constant 0 : i32
    %c0_i32_0 = arith.constant 0 : i32
    return %arg0, %c0_i32 : i32, i32
  }
  func.func @transform_5(%arg0: i32) -> (i32, i32) {
    %c0_i32 = arith.constant 0 : i32
    %c0_i32_0 = arith.constant 0 : i32
    return %arg0, %c0_i32 : i32, i32
  }
}

</mosaic_0001>

<llo_original>
// kernel: tpu_custom_call.1
$region0: #{tpu_custom_call.1}
  #allocation0 [shape = 'u32[]', space=smem, size = 0x4, offset = 0x4, fixed_abs, tag = 'smem constant byte address 0x4 - core index']
  #allocation1 [shape = 'u32[144,128]{1,0:T(1,128)}', space=vmem, size = 0x12000, scoped, tag = 'internal scratch']
  %s0 = inlined_call_operand.vmem [shape: f32[64,32], index: 0, kind: input, shape index: {}]
  %s1 = inlined_call_operand.vmem [shape: f32[32,96], index: 1, kind: input, shape index: {}]
  %s2 = inlined_call_operand.vmem [shape: f32[1,96], index: 2, kind: input, shape index: {}]
  %s3 = inlined_call_operand.vmem [shape: f32[64,32], index: 3, kind: output, shape index: {0}]
  %s4 = inlined_call_operand.vmem [shape: f32[64,32], index: 4, kind: output, shape index: {1}]
  %s5 = inlined_call_operand.vmem [shape: f32[64,32], index: 5, kind: output, shape index: {2}]
  %6 = xla_tuple %s3, %s4, %s5
  %s7 = sld [smem:[#allocation0]]
  $region38: #{tpu_custom_call.1} parent=0
    _
  %s9 = ssub.s32 1, %s7
  %s10 = scalar_select 0, %s9, %s7
  // Predicated region
  $region2: #{tpu_custom_call.1} parent=0 // pred_check
    _
  $region3: #{tpu_custom_call.1} parent=0 // pred_check_branch
    %12 = sbr.rel (0) target = $region5
  $region4: #{tpu_custom_call.1} parent=0 // pred_region
    _
  $region5: #{tpu_custom_call.1} parent=0 // pred_fallthru
    _
  // Predicated region
  $region6: #{tpu_custom_call.1} parent=0 // pred_check
    _
  $region7: #{tpu_custom_call.1} parent=0 // pred_check_branch
    %14 = sbr.rel (0) target = $region9
  $region8: #{tpu_custom_call.1} parent=0 // pred_region
    _
  $region9: #{tpu_custom_call.1} parent=0 // pred_fallthru
    _
  // Predicated region
  $region10: #{tpu_custom_call.1} parent=0 // pred_check
    _
  $region11: #{tpu_custom_call.1} parent=0 // pred_check_branch
    %16 = sbr.rel (0) target = $region13
  $region12: #{tpu_custom_call.1} parent=0 // pred_region
    _
  $region13: #{tpu_custom_call.1} parent=0 // pred_fallthru
    _
  %v17 = vld [vmem:[%s0] sm:$0xff]
  %v18 = vld [vmem:[%s0 + $0x8] sm:$0xff]
  %v19 = vld [vmem:[%s0 + $0x10] sm:$0xff]
  %v20 = vld [vmem:[%s0 + $0x18] sm:$0xff]
  %v21 = vld [vmem:[%s0 + $0x20] sm:$0xff]
  %v22 = vld [vmem:[%s0 + $0x28] sm:$0xff]
  %v23 = vld [vmem:[%s0 + $0x30] sm:$0xff]
  %v24 = vld [vmem:[%s0 + $0x38] sm:$0xff]
  %v25 = vld [vmem:[%s1] sm:$0xff]
  %v26 = vld [vmem:[%s1 + $0x8] sm:$0xff]
  %v27 = vld [vmem:[%s1 + $0x10] sm:$0xff]
  %v28 = vld [vmem:[%s1 + $0x18] sm:$0xff]
  %v29 = vld [vmem:[%s2] sm:$0x1]
  %v31 = vlaneseq
  %v32 = vshrl.u32 %v31, 7
  %v33 = vsub.s32 0, %v32
  %v34 = vrot.slane %v29, %v33
  %vm36 = vcmask 261120
  %v38 = vsel %vm36, %v17, 0
  %v41 = vsel %vm36, %v18, 0
  %v44 = vsel %vm36, %v19, 0
  %v47 = vsel %vm36, %v20, 0
  %v50 = vsel %vm36, %v21, 0
  %v53 = vsel %vm36, %v22, 0
  %v56 = vsel %vm36, %v23, 0
  %v59 = vsel %vm36, %v24, 0
  %61 = vmatprep.subr.mxu0 0.0
  %62 = vmatpush1.msra.mxu0 %v25
  %63 = vmatprep.subr.mxu0 0.0
  %64 = vmatpush1.msra.mxu0 %v26
  %65 = vmatprep.subr.mxu0 0.0
  %66 = vmatpush1.msra.mxu0 %v27
  %67 = vmatprep.subr.mxu0 0.0
  %68 = vmatpush1.msra.mxu0 %v28
  %69 = vmatprep.subr.mxu0 0.0
  %70 = vmatpush1.msra.mxu0 0.0
  %71 = vmatprep.subr.mxu0 0.0
  %72 = vmatpush1.msra.mxu0 0.0
  %73 = vmatprep.subr.mxu0 0.0
  %74 = vmatpush1.msra.mxu0 0.0
  %75 = vmatprep.subr.mxu0 0.0
  %76 = vmatpush1.msra.mxu0 0.0
  %77 = vmatprep.subr.mxu0 0.0
  %78 = vmatpush1.msra.mxu0 0.0
  %79 = vmatprep.subr.mxu0 0.0
  %80 = vmatpush1.msra.mxu0 0.0
  %81 = vmatprep.subr.mxu0 0.0
  %82 = vmatpush1.msra.mxu0 0.0
  %83 = vmatprep.subr.mxu0 0.0
  %84 = vmatpush1.msra.mxu0 0.0
  %85 = vmatprep.subr.mxu0 0.0
  %86 = vmatpush1.msra.mxu0 0.0
  %87 = vmatprep.subr.mxu0 0.0
  %88 = vmatpush1.msra.mxu0 0.0
  %89 = vmatprep.subr.mxu0 0.0
  %90 = vmatpush1.msra.mxu0 0.0
  %91 = vmatprep.subr.mxu0 0.0
  %92 = vmatpush1.msra.mxu0 0.0
  %93 = vmatprep.subr.mxu0 0.0
  %94 = vmatpush1.msra.mxu0 0.0
  %95 = vmatprep.subr.mxu0 0.0
  %96 = vmatpush1.msra.mxu0 0.0
  %97 = vmatprep.subr.mxu0 0.0
  %98 = vmatpush1.msra.mxu0 0.0
  %99 = vmatprep.subr.mxu0 0.0
  %100 = vmatpush1.msra.mxu0 0.0
  %101 = vmatprep.subr.mxu0 0.0
  %102 = vmatpush1.msra.mxu0 0.0
  %103 = vmatprep.subr.mxu0 0.0
  %104 = vmatpush1.msra.mxu0 0.0
  %105 = vmatprep.subr.mxu0 0.0
  %106 = vmatpush1.msra.mxu0 0.0
  %107 = vmatprep.subr.mxu0 0.0
  %108 = vmatpush1.msra.mxu0 0.0
  %109 = vmatprep.subr.mxu0 0.0
  %110 = vmatpush1.msra.mxu0 0.0
  %111 = vmatprep.subr.mxu0 0.0
  %112 = vmatpush1.msra.mxu0 0.0
  %113 = vmatprep.subr.mxu0 0.0
  %114 = vmatpush1.msra.mxu0 0.0
  %115 = vmatprep.subr.mxu0 0.0
  %116 = vmatpush1.msra.mxu0 0.0
  %117 = vmatprep.subr.mxu0 0.0
  %118 = vmatpush1.msra.mxu0 0.0
  %119 = vmatprep.subr.mxu0 0.0
  %120 = vmatpush1.msra.mxu0 0.0
  %121 = vmatprep.subr.mxu0 0.0
  %122 = vmatpush1.msra.mxu0 0.0
  %123 = vmatprep.subr.mxu0 0.0
  %124 = vmatpush1.msra.mxu0 0.0
  %125 = vmatprep.mubr.f32.mxu0 0.0
  %126 = vmatmul.mubr.f32.gmra.mrb[0].mxu0 %v38
  %v127 = vpop.f32.mrb[0].mxu0
  %v128 = vadd.f32 %v34, %v127
  %v129 = vpop.f32.mrb[0].mxu0
  %130 = vmatprep.mubr.f32.mxu0 0.0
  %131 = vmatmul.mubr.f32.gmra.mrb[0].mxu0 %v41
  %v132 = vpop.f32.mrb[0].mxu0
  %v133 = vadd.f32 %v34, %v132
  %v134 = vpop.f32.mrb[0].mxu0
  %135 = vmatprep.mubr.f32.mxu0 0.0
  %136 = vmatmul.mubr.f32.gmra.mrb[0].mxu0 %v44
  %v137 = vpop.f32.mrb[0].mxu0
  %v138 = vadd.f32 %v34, %v137
  %v139 = vpop.f32.mrb[0].mxu0
  %140 = vmatprep.mubr.f32.mxu0 0.0
  %141 = vmatmul.mubr.f32.gmra.mrb[0].mxu0 %v47
  %v142 = vpop.f32.mrb[0].mxu0
  %v143 = vadd.f32 %v34, %v142
  %v144 = vpop.f32.mrb[0].mxu0
  %145 = vmatprep.mubr.f32.mxu0 0.0
  %146 = vmatmul.mubr.f32.gmra.mrb[0].mxu0 %v50
  %v147 = vpop.f32.mrb[0].mxu0
  %v148 = vadd.f32 %v34, %v147
  %v149 = vpop.f32.mrb[0].mxu0
  %150 = vmatprep.mubr.f32.mxu0 0.0
  %151 = vmatmul.mubr.f32.gmra.mrb[0].mxu0 %v53
  %v152 = vpop.f32.mrb[0].mxu0
  %v153 = vadd.f32 %v34, %v152
  %v154 = vpop.f32.mrb[0].mxu0
  %155 = vmatprep.mubr.f32.mxu0 0.0
  %156 = vmatmul.mubr.f32.gmra.mrb[0].mxu0 %v56
  %v157 = vpop.f32.mrb[0].mxu0
  %v158 = vadd.f32 %v34, %v157
  %v159 = vpop.f32.mrb[0].mxu0
  %160 = vmatprep.mubr.f32.mxu0 0.0
  %161 = vmatmul.mubr.f32.gmra.mrb[0].mxu0 %v59
  %v162 = vpop.f32.mrb[0].mxu0
  %v163 = vadd.f32 %v34, %v162
  %v164 = vpop.f32.mrb[0].mxu0
  %165 = vdwg.mxu0
  %166 = vst.msk [vmem:[%s3] sm:$0xff] %vm36, %v128
  %167 = vst.msk [vmem:[%s3 + $0x8] sm:$0xff] %vm36, %v133
  %168 = vst.msk [vmem:[%s3 + $0x10] sm:$0xff] %vm36, %v138
  %169 = vst.msk [vmem:[%s3 + $0x18] sm:$0xff] %vm36, %v143
  %170 = vst.msk [vmem:[%s3 + $0x20] sm:$0xff] %vm36, %v148
  %171 = vst.msk [vmem:[%s3 + $0x28] sm:$0xff] %vm36, %v153
  %172 = vst.msk [vmem:[%s3 + $0x30] sm:$0xff] %vm36, %v158
  %173 = vst.msk [vmem:[%s3 + $0x38] sm:$0xff] %vm36, %v163
  %182 = vrot.lane.b32.xlu0 %v128, 96
  %v183 = vpop.permute.xlu0 %182
  %184 = vrot.lane.b32.xlu0 %v133, 96
  %v185 = vpop.permute.xlu0 %184
  %186 = vrot.lane.b32.xlu0 %v138, 96
  %v187 = vpop.permute.xlu0 %186
  %188 = vrot.lane.b32.xlu0 %v143, 96
  %v189 = vpop.permute.xlu0 %188
  %190 = vrot.lane.b32.xlu0 %v148, 96
  %v191 = vpop.permute.xlu0 %190
  %192 = vrot.lane.b32.xlu0 %v153, 96
  %v193 = vpop.permute.xlu0 %192
  %194 = vrot.lane.b32.xlu0 %v158, 96
  %v195 = vpop.permute.xlu0 %194
  %196 = vrot.lane.b32.xlu0 %v163, 96
  %v197 = vpop.permute.xlu0 %196
  %206 = vst.msk [vmem:[%s4] sm:$0xff] %vm36, %v183
  %207 = vst.msk [vmem:[%s4 + $0x8] sm:$0xff] %vm36, %v185
  %208 = vst.msk [vmem:[%s4 + $0x10] sm:$0xff] %vm36, %v187
  %209 = vst.msk [vmem:[%s4 + $0x18] sm:$0xff] %vm36, %v189
  %210 = vst.msk [vmem:[%s4 + $0x20] sm:$0xff] %vm36, %v191
  %211 = vst.msk [vmem:[%s4 + $0x28] sm:$0xff] %vm36, %v193
  %212 = vst.msk [vmem:[%s4 + $0x30] sm:$0xff] %vm36, %v195
  %213 = vst.msk [vmem:[%s4 + $0x38] sm:$0xff] %vm36, %v197
  %214 = vrot.lane.b32.xlu0 %v128, 64
  %v215 = vpop.permute.xlu0 %214
  %216 = vrot.lane.b32.xlu0 %v133, 64
  %v217 = vpop.permute.xlu0 %216
  %218 = vrot.lane.b32.xlu0 %v138, 64
  %v219 = vpop.permute.xlu0 %218
  %220 = vrot.lane.b32.xlu0 %v143, 64
  %v221 = vpop.permute.xlu0 %220
  %222 = vrot.lane.b32.xlu0 %v148, 64
  %v223 = vpop.permute.xlu0 %222
  %224 = vrot.lane.b32.xlu0 %v153, 64
  %v225 = vpop.permute.xlu0 %224
  %226 = vrot.lane.b32.xlu0 %v158, 64
  %v227 = vpop.permute.xlu0 %226
  %228 = vrot.lane.b32.xlu0 %v163, 64
  %v229 = vpop.permute.xlu0 %228
  %238 = vst.msk [vmem:[%s5] sm:$0xff] %vm36, %v215
  %239 = vst.msk [vmem:[%s5 + $0x8] sm:$0xff] %vm36, %v217
  %240 = vst.msk [vmem:[%s5 + $0x10] sm:$0xff] %vm36, %v219
  %241 = vst.msk [vmem:[%s5 + $0x18] sm:$0xff] %vm36, %v221
  %242 = vst.msk [vmem:[%s5 + $0x20] sm:$0xff] %vm36, %v223
  %243 = vst.msk [vmem:[%s5 + $0x28] sm:$0xff] %vm36, %v225
  %244 = vst.msk [vmem:[%s5 + $0x30] sm:$0xff] %vm36, %v227
  %245 = vst.msk [vmem:[%s5 + $0x38] sm:$0xff] %vm36, %v229
  // Predicated region
  $region14: #{tpu_custom_call.1} parent=0 // pred_check
    _
  $region15: #{tpu_custom_call.1} parent=0 // pred_check_branch
    %247 = sbr.rel (0) target = $region17
  $region16: #{tpu_custom_call.1} parent=0 // pred_region
    _
  $region17: #{tpu_custom_call.1} parent=0 // pred_fallthru
    _
  // Predicated region
  $region18: #{tpu_custom_call.1} parent=0 // pred_check
    _
  $region19: #{tpu_custom_call.1} parent=0 // pred_check_branch
    %249 = sbr.rel (0) target = $region21
  $region20: #{tpu_custom_call.1} parent=0 // pred_region
    _
  $region21: #{tpu_custom_call.1} parent=0 // pred_fallthru
    _
  // Predicated region
  $region22: #{tpu_custom_call.1} parent=0 // pred_check
    _
  $region23: #{tpu_custom_call.1} parent=0 // pred_check_branch
    %251 = sbr.rel (0) target = $region25
  $region24: #{tpu_custom_call.1} parent=0 // pred_region
    _
  $region25: #{tpu_custom_call.1} parent=0 // pred_fallthru
    _
  // Predicated region
  $region26: #{tpu_custom_call.1} parent=0 // pred_check
    _
  $region27: #{tpu_custom_call.1} parent=0 // pred_check_branch
    %253 = sbr.rel (0) target = $region29
  $region28: #{tpu_custom_call.1} parent=0 // pred_region
    _
  $region29: #{tpu_custom_call.1} parent=0 // pred_fallthru
    _
  // Predicated region
  $region30: #{tpu_custom_call.1} parent=0 // pred_check
    _
  $region31: #{tpu_custom_call.1} parent=0 // pred_check_branch
    %255 = sbr.rel (0) target = $region33
  $region32: #{tpu_custom_call.1} parent=0 // pred_region
    _
  $region33: #{tpu_custom_call.1} parent=0 // pred_fallthru
    _
  // Predicated region
  $region34: #{tpu_custom_call.1} parent=0 // pred_check
    _
  $region35: #{tpu_custom_call.1} parent=0 // pred_check_branch
    %257 = sbr.rel (0) target = $region37
  $region36: #{tpu_custom_call.1} parent=0 // pred_region
    _
  $region37: #{tpu_custom_call.1} parent=0 // pred_fallthru
    _

</llo_original>
